<compile_context>
chip_gen: v7x
topology: tpu7x:2x2x1
jax: 0.10.0
libtpu: 0.0.40
codegen_flags: <defaults>
</compile_context>

<pallas_src>
import jax
import jax.numpy as jnp
from jax.experimental import pallas as pl
from jax.experimental.pallas import tpu as pltpu

NUM_LAYERS = 4
LANE = 128          # TPU lane width: last dim of every tile is a multiple of this
SUBLANE_BF16 = 16   # bf16 sublane packing


def _round_up(x, m):
    return (x + m - 1) // m * m


def _vmem_budget_bytes():
    """Per-generation scoped-VMEM ceiling (leave headroom below physical)."""
    try:
        cap = int(pltpu.get_tpu_info().vmem_capacity_bytes)
    except Exception:
        cap = 64 << 20          # conservative default: v7x per-TC VMEM
    return (cap * 7) // 8       # ~56 MiB on v7x, ~112 MiB on v5e/v6e


# ---------------------------------------------------------------------------
# Fused path: all four (padded, bf16) weights stay VMEM-resident; the grid
# iterates over batch tiles only (software-pipelined activation DMA).
# ---------------------------------------------------------------------------
def mlp_fused_kernel(x_ref, w1, b1, w2, b2, w3, b3, w4, b4, o_ref):
    h = x_ref[...]                                   # bf16 activation tile
    acc = None
    for w_ref, b_ref in ((w1, b1), (w2, b2), (w3, b3), (w4, b4)):
        acc = jnp.dot(h, w_ref[...], preferred_element_type=jnp.float32)
        acc = acc + b_ref[...]                       # bias add in f32 (v5e-safe)
        h = acc.astype(jnp.bfloat16)                 # re-quantize for next MXU pass
    o_ref[...] = acc.astype(o_ref.dtype)


# ---------------------------------------------------------------------------
# Large-D fallback: one K/N-tiled matmul+bias kernel per layer, with an f32
# VMEM accumulator and pl.when init/finalize on the "arbitrary" K axis.
# ---------------------------------------------------------------------------
def matmul_bias_kernel(x_ref, w_ref, b_ref, o_ref, acc_ref):
    @pl.when(pl.program_id(2) == 0)
    def _():
        acc_ref[...] = jnp.zeros_like(acc_ref)

    acc_ref[...] += jnp.dot(x_ref[...], w_ref[...],
                            preferred_element_type=jnp.float32)

    @pl.when(pl.program_id(2) == pl.num_programs(2) - 1)
    def _():
        o_ref[...] = (acc_ref[...] + b_ref[...]).astype(o_ref.dtype)


def _linear_layer(h, w, b, out_dtype, tm, tn, tk, vmem_limit):
    Bp, Kp = h.shape
    Np = w.shape[1]
    grid = (Bp // tm, Np // tn, Kp // tk)
    return pl.pallas_call(
        matmul_bias_kernel,
        out_shape=jax.ShapeDtypeStruct((Bp, Np), out_dtype),
        grid=grid,
        in_specs=[pl.BlockSpec((tm, tk), lambda i, j, k: (i, k)),
                  pl.BlockSpec((tk, tn), lambda i, j, k: (k, j)),
                  pl.BlockSpec((1, tn), lambda i, j, k: (0, j))],
        out_specs=pl.BlockSpec((tm, tn), lambda i, j, k: (i, j)),
        scratch_shapes=[pltpu.VMEM((tm, tn), jnp.float32)],
        compiler_params=pltpu.CompilerParams(
            dimension_semantics=("parallel", "parallel", "arbitrary"),
            vmem_limit_bytes=vmem_limit),
    )(h, w, b)


def prepare_params(params, d_pad):
    """One-time prep: transpose torch-layout (D_out, D_in) weights to
    (D_in, D_out), zero-pad to lane-aligned d_pad, cast weights to bf16.
    Biases stay f32 with shape (1, d_pad)."""
    flat = []
    for (w, b) in params:
        d_out, d_in = w.shape
        wt = jnp.zeros((d_pad, d_pad), jnp.float32).at[:d_in, :d_out].set(w.T)
        bp = jnp.zeros((1, d_pad), jnp.float32).at[0, :d_out].set(b)
        flat.append(wt.astype(jnp.bfloat16))
        flat.append(bp)
    return tuple(flat)


def _choose_batch_tiling(B):
    """Pick (b_pad, tile_b): tiny batches pad only to the bf16 sublane multiple;
    big batches use 256-row tiles (fills 256x256 MXU) with >= 2 grid steps."""
    b_min = _round_up(max(B, 1), SUBLANE_BF16)
    if b_min <= 128:
        return b_min, b_min
    tile = 256 if b_min >= 512 else 128
    return _round_up(b_min, tile), tile


def mlp_forward(x, prepped):
    """x: (B, D) f32. prepped: flat tuple (W1,b1,...,W4,b4) from prepare_params."""
    B, D = x.shape
    d_pad = prepped[0].shape[0]
    b_pad, tile_b = _choose_batch_tiling(B)

    # bf16 activation slab (the first matmul quantizes x to bf16 anyway), so
    # this halves input DMA bytes with identical numerics. Zero padding is
    # exact: padded weight rows/cols and padded bias entries are zero.
    x_pad = jnp.zeros((b_pad, d_pad), jnp.bfloat16).at[:B, :D].set(
        x.astype(jnp.bfloat16))

    vmem_budget = _vmem_budget_bytes()

    # Resident footprint with single-buffered weights/biases + double-buffered
    # bf16 input / f32 output activation tiles.
    weight_bytes = NUM_LAYERS * (d_pad * d_pad * 2 + d_pad * 4)
    act_bytes = 2 * tile_b * d_pad * 2 + 2 * tile_b * d_pad * 4
    fused_need = weight_bytes + act_bytes + (4 << 20)   # + headroom

    if fused_need <= vmem_budget:
        act_spec = pl.BlockSpec((tile_b, d_pad), lambda i: (i, 0))
        # Constant block index -> double-buffering buys nothing; single-buffer.
        w_spec = pl.BlockSpec((d_pad, d_pad), lambda i: (0, 0),
                              pipeline_mode=pl.Buffered(1))
        b_spec = pl.BlockSpec((1, d_pad), lambda i: (0, 0),
                              pipeline_mode=pl.Buffered(1))
        in_specs = [act_spec]
        for _ in range(NUM_LAYERS):
            in_specs += [w_spec, b_spec]

        cost = pl.CostEstimate(
            flops=2 * NUM_LAYERS * b_pad * d_pad * d_pad,
            transcendentals=0,
            bytes_accessed=weight_bytes + b_pad * d_pad * 2 + b_pad * d_pad * 4,
        )

        out_pad = pl.pallas_call(
            mlp_fused_kernel,
            out_shape=jax.ShapeDtypeStruct((b_pad, d_pad), x.dtype),
            grid=(b_pad // tile_b,),
            in_specs=in_specs,
            out_specs=act_spec,
            compiler_params=pltpu.CompilerParams(
                dimension_semantics=("parallel",),
                vmem_limit_bytes=int(min(max(fused_need, 16 << 20), vmem_budget)),
            ),
            cost_estimate=cost,
        )(x_pad, *prepped)
    else:
        # Large-D fallback: per-layer K/N-tiled matmuls; intermediates in bf16,
        # last layer written back in the input dtype.
        tn = 256 if d_pad % 256 == 0 else 128
        tk = tn
        tm = tile_b
        layer_need = (2 * (tm * tk * 2 + tk * tn * 2 + tn * 4 + tm * tn * 4)
                      + tm * tn * 4 + (4 << 20))
        layer_vmem = int(min(max(layer_need, 16 << 20), vmem_budget))
        h = x_pad
        for li in range(NUM_LAYERS):
            out_dtype = x.dtype if li == NUM_LAYERS - 1 else jnp.bfloat16
            h = _linear_layer(h, prepped[2 * li], prepped[2 * li + 1],
                              out_dtype, tm, tn, tk, layer_vmem)
        out_pad = h

    return out_pad[:B, :D]


def init_params(key, dim):
    """Deterministic init mirroring torch.nn.Linear default (U(+/- 1/sqrt(fan_in)))."""
    params = []
    bound = 1.0 / jnp.sqrt(dim)
    for _ in range(NUM_LAYERS):
        kw, kb, key = jax.random.split(key, 3)
        w = jax.random.uniform(kw, (dim, dim), jnp.float32, -bound, bound)
        b = jax.random.uniform(kb, (dim,), jnp.float32, -bound, bound)
        params.append((w, b))
    return params


def mlp_reference(x, params):
    """Pure-JAX reference mirroring the kernel's mixed precision:
    bf16 matmul inputs, f32 accumulation, f32 bias add."""
    h = x
    for (w, b) in params:
        a = h.astype(jnp.bfloat16).astype(jnp.float32)
        wt = w.T.astype(jnp.bfloat16).astype(jnp.float32)
        h = jnp.dot(a, wt, preferred_element_type=jnp.float32) + b
    return h


if __name__ == "__main__":
    B, D = 8, 32
    key = jax.random.PRNGKey(0)
    kx, kp = jax.random.split(key)
    x = jax.random.normal(kx, (B, D), jnp.float32)
    params = init_params(kp, D)

    # One-time parameter prep (transpose + pad + bf16 cast) hoisted out of forward.
    d_pad = _round_up(D, LANE)
    prepped = prepare_params(params, d_pad)

    fwd = jax.jit(mlp_forward)
    out = fwd(x, prepped)
    jax.block_until_ready(out)

    ref = mlp_reference(x, params)
    assert out.shape == (B, D)
    assert jnp.allclose(out, ref, atol=2e-3, rtol=2e-3), "mismatch vs reference"
    print("KERNEL_OK")
</pallas_src>

<mosaic_0001>
module attributes {stable_mosaic.version = 11 : i64} {
  func.func @mlp_fused_kernel(%arg0: i32, %arg1: memref<16x128xbf16, #tpu.memory_space<vmem>>, %arg2: memref<128x128xbf16, #tpu.memory_space<vmem>>, %arg3: memref<1x128xf32, #tpu.memory_space<vmem>>, %arg4: memref<128x128xbf16, #tpu.memory_space<vmem>>, %arg5: memref<1x128xf32, #tpu.memory_space<vmem>>, %arg6: memref<128x128xbf16, #tpu.memory_space<vmem>>, %arg7: memref<1x128xf32, #tpu.memory_space<vmem>>, %arg8: memref<128x128xbf16, #tpu.memory_space<vmem>>, %arg9: memref<1x128xf32, #tpu.memory_space<vmem>>, %arg10: memref<16x128xf32, #tpu.memory_space<vmem>>) attributes {dimension_semantics = [#tpu.dimension_semantics<parallel>], iteration_bounds = array<i64: 1>, scalar_prefetch = 0 : i64, scratch_operands = 0 : i64, tpu.core_type = #tpu.core_type<tc>, window_params = [{transform_indices = @transform_0, window_bounds = array<i64: 16, 128>}, {pipeline_mode = #tpu.pipeline_mode<synchronous>, transform_indices = @transform_1, window_bounds = array<i64: 128, 128>}, {pipeline_mode = #tpu.pipeline_mode<synchronous>, transform_indices = @transform_2, window_bounds = array<i64: 1, 128>}, {pipeline_mode = #tpu.pipeline_mode<synchronous>, transform_indices = @transform_3, window_bounds = array<i64: 128, 128>}, {pipeline_mode = #tpu.pipeline_mode<synchronous>, transform_indices = @transform_4, window_bounds = array<i64: 1, 128>}, {pipeline_mode = #tpu.pipeline_mode<synchronous>, transform_indices = @transform_5, window_bounds = array<i64: 128, 128>}, {pipeline_mode = #tpu.pipeline_mode<synchronous>, transform_indices = @transform_6, window_bounds = array<i64: 1, 128>}, {pipeline_mode = #tpu.pipeline_mode<synchronous>, transform_indices = @transform_7, window_bounds = array<i64: 128, 128>}, {pipeline_mode = #tpu.pipeline_mode<synchronous>, transform_indices = @transform_8, window_bounds = array<i64: 1, 128>}, {transform_indices = @transform_9, window_bounds = array<i64: 16, 128>}]} {
    %c0 = arith.constant 0 : index
    %c0_0 = arith.constant 0 : index
    %0 = vector.load %arg1[%c0, %c0_0] : memref<16x128xbf16, #tpu.memory_space<vmem>>, vector<16x128xbf16>
    %c0_1 = arith.constant 0 : index
    %c0_2 = arith.constant 0 : index
    %1 = vector.load %arg2[%c0_1, %c0_2] : memref<128x128xbf16, #tpu.memory_space<vmem>>, vector<128x128xbf16>
    %cst = arith.constant dense<0.000000e+00> : vector<16x128xf32>
    %2 = tpu.matmul %0, %1, %cst {dimension_numbers = #tpu.dot_dimension_numbers<[1], [0], [0], [1], [0, 0, 1, 1], [], []>} : vector<16x128xbf16>, vector<128x128xbf16>, vector<16x128xf32> -> vector<16x128xf32>
    %c0_3 = arith.constant 0 : index
    %c0_4 = arith.constant 0 : index
    %3 = vector.load %arg3[%c0_3, %c0_4] : memref<1x128xf32, #tpu.memory_space<vmem>>, vector<1x128xf32>
    %4 = vector.broadcast %3 : vector<1x128xf32> to vector<16x128xf32>
    %5 = arith.addf %2, %4 : vector<16x128xf32>
    %6 = arith.truncf %5 : vector<16x128xf32> to vector<16x128xbf16>
    %c0_5 = arith.constant 0 : index
    %c0_6 = arith.constant 0 : index
    %7 = vector.load %arg4[%c0_5, %c0_6] : memref<128x128xbf16, #tpu.memory_space<vmem>>, vector<128x128xbf16>
    %cst_7 = arith.constant dense<0.000000e+00> : vector<16x128xf32>
    %8 = tpu.matmul %6, %7, %cst_7 {dimension_numbers = #tpu.dot_dimension_numbers<[1], [0], [0], [1], [0, 0, 1, 1], [], []>} : vector<16x128xbf16>, vector<128x128xbf16>, vector<16x128xf32> -> vector<16x128xf32>
    %c0_8 = arith.constant 0 : index
    %c0_9 = arith.constant 0 : index
    %9 = vector.load %arg5[%c0_8, %c0_9] : memref<1x128xf32, #tpu.memory_space<vmem>>, vector<1x128xf32>
    %10 = vector.broadcast %9 : vector<1x128xf32> to vector<16x128xf32>
    %11 = arith.addf %8, %10 : vector<16x128xf32>
    %12 = arith.truncf %11 : vector<16x128xf32> to vector<16x128xbf16>
    %c0_10 = arith.constant 0 : index
    %c0_11 = arith.constant 0 : index
    %13 = vector.load %arg6[%c0_10, %c0_11] : memref<128x128xbf16, #tpu.memory_space<vmem>>, vector<128x128xbf16>
    %cst_12 = arith.constant dense<0.000000e+00> : vector<16x128xf32>
    %14 = tpu.matmul %12, %13, %cst_12 {dimension_numbers = #tpu.dot_dimension_numbers<[1], [0], [0], [1], [0, 0, 1, 1], [], []>} : vector<16x128xbf16>, vector<128x128xbf16>, vector<16x128xf32> -> vector<16x128xf32>
    %c0_13 = arith.constant 0 : index
    %c0_14 = arith.constant 0 : index
    %15 = vector.load %arg7[%c0_13, %c0_14] : memref<1x128xf32, #tpu.memory_space<vmem>>, vector<1x128xf32>
    %16 = vector.broadcast %15 : vector<1x128xf32> to vector<16x128xf32>
    %17 = arith.addf %14, %16 : vector<16x128xf32>
    %18 = arith.truncf %17 : vector<16x128xf32> to vector<16x128xbf16>
    %c0_15 = arith.constant 0 : index
    %c0_16 = arith.constant 0 : index
    %19 = vector.load %arg8[%c0_15, %c0_16] : memref<128x128xbf16, #tpu.memory_space<vmem>>, vector<128x128xbf16>
    %cst_17 = arith.constant dense<0.000000e+00> : vector<16x128xf32>
    %20 = tpu.matmul %18, %19, %cst_17 {dimension_numbers = #tpu.dot_dimension_numbers<[1], [0], [0], [1], [0, 0, 1, 1], [], []>} : vector<16x128xbf16>, vector<128x128xbf16>, vector<16x128xf32> -> vector<16x128xf32>
    %c0_18 = arith.constant 0 : index
    %c0_19 = arith.constant 0 : index
    %21 = vector.load %arg9[%c0_18, %c0_19] : memref<1x128xf32, #tpu.memory_space<vmem>>, vector<1x128xf32>
    %22 = vector.broadcast %21 : vector<1x128xf32> to vector<16x128xf32>
    %23 = arith.addf %20, %22 : vector<16x128xf32>
    %c0_20 = arith.constant 0 : index
    %c0_21 = arith.constant 0 : index
    %24 = vector.load %arg10[%c0_20, %c0_21] : memref<16x128xf32, #tpu.memory_space<vmem>>, vector<16x128xf32>
    tpu.vector_store %arg10[%c0_20, %c0_21], %23 {strides = array<i32>} : memref<16x128xf32, #tpu.memory_space<vmem>>, vector<16x128xf32>,
    return
  }
  func.func @transform_0(%arg0: i32) -> (i32, i32) {
    %c0_i32 = arith.constant 0 : i32
    %c0_i32_0 = arith.constant 0 : i32
    return %arg0, %c0_i32 : i32, i32
  }
  func.func @transform_1(%arg0: i32) -> (i32, i32) {
    %c0_i32 = arith.constant 0 : i32
    %c0_i32_0 = arith.constant 0 : i32
    %c0_i32_1 = arith.constant 0 : i32
    return %c0_i32, %c0_i32_0 : i32, i32
  }
  func.func @transform_2(%arg0: i32) -> (i32, i32) {
    %c0_i32 = arith.constant 0 : i32
    %c0_i32_0 = arith.constant 0 : i32
    %c0_i32_1 = arith.constant 0 : i32
    return %c0_i32, %c0_i32_0 : i32, i32
  }
  func.func @transform_3(%arg0: i32) -> (i32, i32) {
    %c0_i32 = arith.constant 0 : i32
    %c0_i32_0 = arith.constant 0 : i32
    %c0_i32_1 = arith.constant 0 : i32
    return %c0_i32, %c0_i32_0 : i32, i32
  }
  func.func @transform_4(%arg0: i32) -> (i32, i32) {
    %c0_i32 = arith.constant 0 : i32
    %c0_i32_0 = arith.constant 0 : i32
    %c0_i32_1 = arith.constant 0 : i32
    return %c0_i32, %c0_i32_0 : i32, i32
  }
  func.func @transform_5(%arg0: i32) -> (i32, i32) {
    %c0_i32 = arith.constant 0 : i32
    %c0_i32_0 = arith.constant 0 : i32
    %c0_i32_1 = arith.constant 0 : i32
    return %c0_i32, %c0_i32_0 : i32, i32
  }
  func.func @transform_6(%arg0: i32) -> (i32, i32) {
    %c0_i32 = arith.constant 0 : i32
    %c0_i32_0 = arith.constant 0 : i32
    %c0_i32_1 = arith.constant 0 : i32
    return %c0_i32, %c0_i32_0 : i32, i32
  }
  func.func @transform_7(%arg0: i32) -> (i32, i32) {
    %c0_i32 = arith.constant 0 : i32
    %c0_i32_0 = arith.constant 0 : i32
    %c0_i32_1 = arith.constant 0 : i32
    return %c0_i32, %c0_i32_0 : i32, i32
  }
  func.func @transform_8(%arg0: i32) -> (i32, i32) {
    %c0_i32 = arith.constant 0 : i32
    %c0_i32_0 = arith.constant 0 : i32
    %c0_i32_1 = arith.constant 0 : i32
    return %c0_i32, %c0_i32_0 : i32, i32
  }
  func.func @transform_9(%arg0: i32) -> (i32, i32) {
    %c0_i32 = arith.constant 0 : i32
    %c0_i32_0 = arith.constant 0 : i32
    return %arg0, %c0_i32 : i32, i32
  }
}

</mosaic_0001>

<llo_original>
// kernel: mlp_forward.1
$region0: #{mlp_forward.1}
  #allocation0 [shape = 'u32[]', space=smem, size = 0x4, offset = 0x4, fixed_abs, tag = 'smem constant byte address 0x4 - core index']
  #allocation1 [shape = 'u32[144,128]{1,0:T(1,128)}', space=vmem, size = 0x12000, scoped, tag = 'internal scratch']
  %s0 = inlined_call_operand.vmem [shape: bf16[16,128], index: 0, kind: input, shape index: {}]
  %s1 = inlined_call_operand.hbm [shape: bf16[128,128], index: 1, kind: input, shape index: {}]
  %s2 = inlined_call_operand.vmem [shape: f32[1,128], index: 2, kind: input, shape index: {}]
  %s3 = inlined_call_operand.hbm [shape: bf16[128,128], index: 3, kind: input, shape index: {}]
  %s4 = inlined_call_operand.vmem [shape: f32[1,128], index: 4, kind: input, shape index: {}]
  %s5 = inlined_call_operand.hbm [shape: bf16[128,128], index: 5, kind: input, shape index: {}]
  %s6 = inlined_call_operand.vmem [shape: f32[1,128], index: 6, kind: input, shape index: {}]
  %s7 = inlined_call_operand.hbm [shape: bf16[128,128], index: 7, kind: input, shape index: {}]
  %s8 = inlined_call_operand.vmem [shape: f32[1,128], index: 8, kind: input, shape index: {}]
  %s9 = inlined_call_operand.vmem [shape: f32[16,128], index: 9, kind: output, shape index: {}]
  %s10 = sld [smem:[#allocation0]]
  $region62: #{mlp_forward.1} parent=0
    _
  %s12 = ssub.s32 1, %s10
  %s13 = scalar_select 0, %s12, %s10
  $region1: #{mlp_forward.1} parent=0
    #allocation2 [shape = 'u8[32768]{0}', space=vmem, size = 0x8000, scoped, tag = 'input window, operand 1, single buffered']
    #allocation3 [shape = 's32[1]{0}', space=sflag, size = 0x4, scoped, tag = 'scoped memory for mlp_forward.1']
    #allocation4 [shape = 'u8[32768]{0}', space=vmem, size = 0x8000, scoped, tag = 'input window, operand 3, single buffered']
    #allocation5 [shape = 's32[1]{0}', space=sflag, size = 0x4, scoped, tag = 'scoped memory for mlp_forward.1']
    #allocation6 [shape = 'u8[32768]{0}', space=vmem, size = 0x8000, scoped, tag = 'input window, operand 5, single buffered']
    #allocation7 [shape = 'u8[32768]{0}', space=vmem, size = 0x8000, scoped, tag = 'input window, operand 7, single buffered']
    #allocation8 [shape = 's32[1]{0}', space=sflag, size = 0x4, scoped, tag = 'scoped memory for mlp_forward.1']
    %14 = vsyncpa [#allocation3], 0
    %15 = vsyncpa [#allocation5], 0
    %16 = vsyncpa [#allocation8], 0
    // Predicated region
    $region2: #{mlp_forward.1} parent=1 // pred_check
      _
    $region3: #{mlp_forward.1} parent=1 // pred_check_branch
      %18 = sbr.rel (0) target = $region5
    $region4: #{mlp_forward.1} parent=1 // pred_region
      _
    $region5: #{mlp_forward.1} parent=1 // pred_fallthru
      _
    // Predicated region
    $region6: #{mlp_forward.1} parent=1 // pred_check
      _
    $region7: #{mlp_forward.1} parent=1 // pred_check_branch
      %20 = sbr.rel (0) target = $region9
    $region8: #{mlp_forward.1} parent=1 // pred_region
      %s22 = ssub.s32 1024, 1024
      %23 = vsyncadd [#allocation3], %s22
      %s24 = sshll.u32 [#allocation2], 4
      %s25 = int_to_ptr.vmem [resolvable:$true] %s24
      %30 = dma.hbm_to_vmem [thread:$0]  %s1, 1024, %s25, [#allocation3], 64, 64, 4
    $region9: #{mlp_forward.1} parent=1 // pred_fallthru
      _
    // Predicated region
    $region10: #{mlp_forward.1} parent=1 // pred_check
      _
    $region11: #{mlp_forward.1} parent=1 // pred_check_branch
      %32 = sbr.rel (0) target = $region13
    $region12: #{mlp_forward.1} parent=1 // pred_region
      _
    $region13: #{mlp_forward.1} parent=1 // pred_fallthru
      _
    // Predicated region
    $region14: #{mlp_forward.1} parent=1 // pred_check
      _
    $region15: #{mlp_forward.1} parent=1 // pred_check_branch
      %34 = sbr.rel (0) target = $region17
    $region16: #{mlp_forward.1} parent=1 // pred_region
      %s36 = ssub.s32 1024, 1024
      %37 = vsyncadd [#allocation5], %s36
      %s38 = sshll.u32 [#allocation4], 4
      %s39 = int_to_ptr.vmem [resolvable:$true] %s38
      %44 = dma.hbm_to_vmem [thread:$0]  %s3, 1024, %s39, [#allocation5], 64, 64, 4
    $region17: #{mlp_forward.1} parent=1 // pred_fallthru
      _
    // Predicated region
    $region18: #{mlp_forward.1} parent=1 // pred_check
      _
    $region19: #{mlp_forward.1} parent=1 // pred_check_branch
      %46 = sbr.rel (0) target = $region21
    $region20: #{mlp_forward.1} parent=1 // pred_region
      _
    $region21: #{mlp_forward.1} parent=1 // pred_fallthru
      _
    // Predicated region
    $region22: #{mlp_forward.1} parent=1 // pred_check
      _
    $region23: #{mlp_forward.1} parent=1 // pred_check_branch
      %48 = sbr.rel (0) target = $region25
    $region24: #{mlp_forward.1} parent=1 // pred_region
      %s50 = ssub.s32 1024, 1024
      %51 = vsyncadd [#allocation5], %s50
      %s52 = sshll.u32 [#allocation6], 4
      %s53 = int_to_ptr.vmem [resolvable:$true] %s52
      %58 = dma.hbm_to_vmem [thread:$0]  %s5, 1024, %s53, [#allocation5], 64, 64, 4
    $region25: #{mlp_forward.1} parent=1 // pred_fallthru
      _
    // Predicated region
    $region26: #{mlp_forward.1} parent=1 // pred_check
      _
    $region27: #{mlp_forward.1} parent=1 // pred_check_branch
      %60 = sbr.rel (0) target = $region29
    $region28: #{mlp_forward.1} parent=1 // pred_region
      _
    $region29: #{mlp_forward.1} parent=1 // pred_fallthru
      _
    // Predicated region
    $region30: #{mlp_forward.1} parent=1 // pred_check
      _
    $region31: #{mlp_forward.1} parent=1 // pred_check_branch
      %62 = sbr.rel (0) target = $region33
    $region32: #{mlp_forward.1} parent=1 // pred_region
      %s64 = ssub.s32 1024, 1024
      %65 = vsyncadd [#allocation8], %s64
      %s66 = sshll.u32 [#allocation7], 4
      %s67 = int_to_ptr.vmem [resolvable:$true] %s66
      %72 = dma.hbm_to_vmem [thread:$0]  %s7, 1024, %s67, [#allocation8], 64, 64, 4
    $region33: #{mlp_forward.1} parent=1 // pred_fallthru
      _
    // Predicated region
    $region34: #{mlp_forward.1} parent=1 // pred_check
      _
    $region35: #{mlp_forward.1} parent=1 // pred_check_branch
      %74 = sbr.rel (0) target = $region37
    $region36: #{mlp_forward.1} parent=1 // pred_region
      _
    $region37: #{mlp_forward.1} parent=1 // pred_fallthru
      _
    // Predicated region
    $region38: #{mlp_forward.1} parent=1 // pred_check
      _
    $region39: #{mlp_forward.1} parent=1 // pred_check_branch
      %76 = sbr.rel (0) target = $region41
    $region40: #{mlp_forward.1} parent=1 // pred_region
      %77 = dma.done [#allocation3], 1024
    $region41: #{mlp_forward.1} parent=1 // pred_fallthru
      _
    // Predicated region
    $region42: #{mlp_forward.1} parent=1 // pred_check
      _
    $region43: #{mlp_forward.1} parent=1 // pred_check_branch
      %79 = sbr.rel (0) target = $region45
    $region44: #{mlp_forward.1} parent=1 // pred_region
      %80 = dma.done [#allocation5], 1024
    $region45: #{mlp_forward.1} parent=1 // pred_fallthru
      _
    // Predicated region
    $region46: #{mlp_forward.1} parent=1 // pred_check
      _
    $region47: #{mlp_forward.1} parent=1 // pred_check_branch
      %82 = sbr.rel (0) target = $region49
    $region48: #{mlp_forward.1} parent=1 // pred_region
      %83 = dma.done [#allocation5], 1024
    $region49: #{mlp_forward.1} parent=1 // pred_fallthru
      _
    // Predicated region
    $region50: #{mlp_forward.1} parent=1 // pred_check
      _
    $region51: #{mlp_forward.1} parent=1 // pred_check_branch
      %85 = sbr.rel (0) target = $region53
    $region52: #{mlp_forward.1} parent=1 // pred_region
      %86 = dma.done [#allocation8], 1024
    $region53: #{mlp_forward.1} parent=1 // pred_fallthru
      _
    %v88 = vld [vmem:[%s0] sm:$0xf]
    %v89 = vld [vmem:[%s0 + $0x4] sm:$0xf]
    %v90 = vld [vmem:[#allocation2] sm:$0xf]
    %v91 = vld [vmem:[#allocation2 + $0x4] sm:$0xf]
    %v92 = vld [vmem:[#allocation2 + $0x8] sm:$0xf]
    %v93 = vld [vmem:[#allocation2 + $0xc] sm:$0xf]
    %v94 = vld [vmem:[#allocation2 + $0x10] sm:$0xf]
    %v95 = vld [vmem:[#allocation2 + $0x14] sm:$0xf]
    %v96 = vld [vmem:[#allocation2 + $0x18] sm:$0xf]
    %v97 = vld [vmem:[#allocation2 + $0x1c] sm:$0xf]
    %v98 = vld [vmem:[#allocation2 + $0x20] sm:$0xf]
    %v99 = vld [vmem:[#allocation2 + $0x24] sm:$0xf]
    %v100 = vld [vmem:[#allocation2 + $0x28] sm:$0xf]
    %v101 = vld [vmem:[#allocation2 + $0x2c] sm:$0xf]
    %v102 = vld [vmem:[#allocation2 + $0x30] sm:$0xf]
    %v103 = vld [vmem:[#allocation2 + $0x34] sm:$0xf]
    %v104 = vld [vmem:[#allocation2 + $0x38] sm:$0xf]
    %v105 = vld [vmem:[#allocation2 + $0x3c] sm:$0xf]
    %v106 = vld [vmem:[%s2] sm:$0x1]
    %v108 = vlaneseq
    %v109 = vshrl.u32 %v108, 7
    %v110 = vsub.s32 0, %v109
    %v111 = vrot.slane %v106, %v110
    %v115 = vunpack.c.l.b16 %v88
    %v116 = vunpack.c.l.b16 %v89
    %v117 = vpack.c.b16 %v116, %v115
    %v135 = vunpack.c.l.b16 %v90
    %v136 = vunpack.c.l.b16 %v91
    %v137 = vunpack.c.l.b16 %v92
    %v138 = vunpack.c.l.b16 %v93
    %v139 = vunpack.c.l.b16 %v94
    %v140 = vunpack.c.l.b16 %v95
    %v141 = vunpack.c.l.b16 %v96
    %v142 = vunpack.c.l.b16 %v97
    %v143 = vunpack.c.l.b16 %v98
    %v144 = vunpack.c.l.b16 %v99
    %v145 = vunpack.c.l.b16 %v100
    %v146 = vunpack.c.l.b16 %v101
    %v147 = vunpack.c.l.b16 %v102
    %v148 = vunpack.c.l.b16 %v103
    %v149 = vunpack.c.l.b16 %v104
    %v150 = vunpack.c.l.b16 %v105
    %v151 = vpack.c.b16 %v136, %v135
    %v152 = vpack.c.b16 %v138, %v137
    %v153 = vpack.c.b16 %v140, %v139
    %v154 = vpack.c.b16 %v142, %v141
    %v155 = vpack.c.b16 %v144, %v143
    %v156 = vpack.c.b16 %v146, %v145
    %v157 = vpack.c.b16 %v148, %v147
    %v158 = vpack.c.b16 %v150, %v149
    %167 = vmatprep.subr.bf16.mxu0 0
    %168 = vmatpush1.bf16.msra.mxu0 %v151
    %169 = vmatprep.subr.bf16.mxu0 0
    %170 = vmatpush1.bf16.msra.mxu0 %v152
    %171 = vmatprep.subr.bf16.mxu0 0
    %172 = vmatpush1.bf16.msra.mxu0 %v153
    %173 = vmatprep.subr.bf16.mxu0 0
    %174 = vmatpush1.bf16.msra.mxu0 %v154
    %175 = vmatprep.subr.bf16.mxu0 0
    %176 = vmatpush1.bf16.msra.mxu0 %v155
    %177 = vmatprep.subr.bf16.mxu0 0
    %178 = vmatpush1.bf16.msra.mxu0 %v156
    %179 = vmatprep.subr.bf16.mxu0 0
    %180 = vmatpush1.bf16.msra.mxu0 %v157
    %181 = vmatprep.subr.bf16.mxu0 0
    %182 = vmatpush1.bf16.msra.mxu0 %v158
    %183 = vmatprep.subr.bf16.mxu0 0
    %184 = vmatpush1.bf16.msra.mxu0 0
    %185 = vmatprep.subr.bf16.mxu0 0
    %186 = vmatpush1.bf16.msra.mxu0 0
    %187 = vmatprep.subr.bf16.mxu0 0
    %188 = vmatpush1.bf16.msra.mxu0 0
    %189 = vmatprep.subr.bf16.mxu0 0
    %190 = vmatpush1.bf16.msra.mxu0 0
    %191 = vmatprep.subr.bf16.mxu0 0
    %192 = vmatpush1.bf16.msra.mxu0 0
    %193 = vmatprep.subr.bf16.mxu0 0
    %194 = vmatpush1.bf16.msra.mxu0 0
    %195 = vmatprep.subr.bf16.mxu0 0
    %196 = vmatpush1.bf16.msra.mxu0 0
    %197 = vmatprep.subr.bf16.mxu0 0
    %198 = vmatpush1.bf16.msra.mxu0 0
    %199 = vmatprep.mubr.bf16.mxu0 0
    %200 = vmatmul.mubr.bf16.gmra.mrb[0].mxu0 %v117
    %v201 = vpop.f32.mrb[0].mxu0
    %v202 = vadd.f32 %v111, %v201
    %v203 = vpop.f32.mrb[0].mxu0
    %v204 = vpop.f32.mrb[0].mxu0
    %v205 = vadd.f32 %v111, %v204
    %v206 = vpop.f32.mrb[0].mxu0
    %207 = vdwg.mxu0
    %v208 = vpack.c.bf16 %v205, %v202
    %v209 = vld [vmem:[#allocation4] sm:$0xf]
    %v210 = vld [vmem:[#allocation4 + $0x4] sm:$0xf]
    %v211 = vld [vmem:[#allocation4 + $0x8] sm:$0xf]
    %v212 = vld [vmem:[#allocation4 + $0xc] sm:$0xf]
    %v213 = vld [vmem:[#allocation4 + $0x10] sm:$0xf]
    %v214 = vld [vmem:[#allocation4 + $0x14] sm:$0xf]
    %v215 = vld [vmem:[#allocation4 + $0x18] sm:$0xf]
    %v216 = vld [vmem:[#allocation4 + $0x1c] sm:$0xf]
    %v217 = vld [vmem:[#allocation4 + $0x20] sm:$0xf]
    %v218 = vld [vmem:[#allocation4 + $0x24] sm:$0xf]
    %v219 = vld [vmem:[#allocation4 + $0x28] sm:$0xf]
    %v220 = vld [vmem:[#allocation4 + $0x2c] sm:$0xf]
    %v221 = vld [vmem:[#allocation4 + $0x30] sm:$0xf]
    %v222 = vld [vmem:[#allocation4 + $0x34] sm:$0xf]
    %v223 = vld [vmem:[#allocation4 + $0x38] sm:$0xf]
    %v224 = vld [vmem:[#allocation4 + $0x3c] sm:$0xf]
    %v225 = vld [vmem:[%s4] sm:$0x1]
    %v227 = vlaneseq
    %v228 = vshrl.u32 %v227, 7
    %v229 = vsub.s32 0, %v228
    %v230 = vrot.slane %v225, %v229
    %v248 = vunpack.c.l.b16 %v209
    %v249 = vunpack.c.l.b16 %v210
    %v250 = vunpack.c.l.b16 %v211
    %v251 = vunpack.c.l.b16 %v212
    %v252 = vunpack.c.l.b16 %v213
    %v253 = vunpack.c.l.b16 %v214
    %v254 = vunpack.c.l.b16 %v215
    %v255 = vunpack.c.l.b16 %v216
    %v256 = vunpack.c.l.b16 %v217
    %v257 = vunpack.c.l.b16 %v218
    %v258 = vunpack.c.l.b16 %v219
    %v259 = vunpack.c.l.b16 %v220
    %v260 = vunpack.c.l.b16 %v221
    %v261 = vunpack.c.l.b16 %v222
    %v262 = vunpack.c.l.b16 %v223
    %v263 = vunpack.c.l.b16 %v224
    %v264 = vpack.c.b16 %v249, %v248
    %v265 = vpack.c.b16 %v251, %v250
    %v266 = vpack.c.b16 %v253, %v252
    %v267 = vpack.c.b16 %v255, %v254
    %v268 = vpack.c.b16 %v257, %v256
    %v269 = vpack.c.b16 %v259, %v258
    %v270 = vpack.c.b16 %v261, %v260
    %v271 = vpack.c.b16 %v263, %v262
    %280 = vmatprep.subr.bf16.mxu0 0
    %281 = vmatpush1.bf16.msra.mxu0 %v264
    %282 = vmatprep.subr.bf16.mxu0 0
    %283 = vmatpush1.bf16.msra.mxu0 %v265
    %284 = vmatprep.subr.bf16.mxu0 0
    %285 = vmatpush1.bf16.msra.mxu0 %v266
    %286 = vmatprep.subr.bf16.mxu0 0
    %287 = vmatpush1.bf16.msra.mxu0 %v267
    %288 = vmatprep.subr.bf16.mxu0 0
    %289 = vmatpush1.bf16.msra.mxu0 %v268
    %290 = vmatprep.subr.bf16.mxu0 0
    %291 = vmatpush1.bf16.msra.mxu0 %v269
    %292 = vmatprep.subr.bf16.mxu0 0
    %293 = vmatpush1.bf16.msra.mxu0 %v270
    %294 = vmatprep.subr.bf16.mxu0 0
    %295 = vmatpush1.bf16.msra.mxu0 %v271
    %296 = vmatprep.subr.bf16.mxu0 0
    %297 = vmatpush1.bf16.msra.mxu0 0
    %298 = vmatprep.subr.bf16.mxu0 0
    %299 = vmatpush1.bf16.msra.mxu0 0
    %300 = vmatprep.subr.bf16.mxu0 0
    %301 = vmatpush1.bf16.msra.mxu0 0
    %302 = vmatprep.subr.bf16.mxu0 0
    %303 = vmatpush1.bf16.msra.mxu0 0
    %304 = vmatprep.subr.bf16.mxu0 0
    %305 = vmatpush1.bf16.msra.mxu0 0
    %306 = vmatprep.subr.bf16.mxu0 0
    %307 = vmatpush1.bf16.msra.mxu0 0
    %308 = vmatprep.subr.bf16.mxu0 0
    %309 = vmatpush1.bf16.msra.mxu0 0
    %310 = vmatprep.subr.bf16.mxu0 0
    %311 = vmatpush1.bf16.msra.mxu0 0
    %312 = vmatprep.mubr.bf16.mxu0 0
    %313 = vmatmul.mubr.bf16.gmra.mrb[0].mxu0 %v208
    %v314 = vpop.f32.mrb[0].mxu0
    %v315 = vadd.f32 %v230, %v314
    %v316 = vpop.f32.mrb[0].mxu0
    %v317 = vpop.f32.mrb[0].mxu0
    %v318 = vadd.f32 %v230, %v317
    %v319 = vpop.f32.mrb[0].mxu0
    %320 = vdwg.mxu0
    %v321 = vpack.c.bf16 %v318, %v315
    %v322 = vld [vmem:[#allocation6] sm:$0xf]
    %v323 = vld [vmem:[#allocation6 + $0x4] sm:$0xf]
    %v324 = vld [vmem:[#allocation6 + $0x8] sm:$0xf]
    %v325 = vld [vmem:[#allocation6 + $0xc] sm:$0xf]
    %v326 = vld [vmem:[#allocation6 + $0x10] sm:$0xf]
    %v327 = vld [vmem:[#allocation6 + $0x14] sm:$0xf]
    %v328 = vld [vmem:[#allocation6 + $0x18] sm:$0xf]
    %v329 = vld [vmem:[#allocation6 + $0x1c] sm:$0xf]
    %v330 = vld [vmem:[#allocation6 + $0x20] sm:$0xf]
    %v331 = vld [vmem:[#allocation6 + $0x24] sm:$0xf]
    %v332 = vld [vmem:[#allocation6 + $0x28] sm:$0xf]
    %v333 = vld [vmem:[#allocation6 + $0x2c] sm:$0xf]
    %v334 = vld [vmem:[#allocation6 + $0x30] sm:$0xf]
    %v335 = vld [vmem:[#allocation6 + $0x34] sm:$0xf]
    %v336 = vld [vmem:[#allocation6 + $0x38] sm:$0xf]
    %v337 = vld [vmem:[#allocation6 + $0x3c] sm:$0xf]
    %v338 = vld [vmem:[%s6] sm:$0x1]
    %v340 = vlaneseq
    %v341 = vshrl.u32 %v340, 7
    %v342 = vsub.s32 0, %v341
    %v343 = vrot.slane %v338, %v342
    %v361 = vunpack.c.l.b16 %v322
    %v362 = vunpack.c.l.b16 %v323
    %v363 = vunpack.c.l.b16 %v324
    %v364 = vunpack.c.l.b16 %v325
    %v365 = vunpack.c.l.b16 %v326
    %v366 = vunpack.c.l.b16 %v327
    %v367 = vunpack.c.l.b16 %v328
    %v368 = vunpack.c.l.b16 %v329
    %v369 = vunpack.c.l.b16 %v330
    %v370 = vunpack.c.l.b16 %v331
    %v371 = vunpack.c.l.b16 %v332
    %v372 = vunpack.c.l.b16 %v333
    %v373 = vunpack.c.l.b16 %v334
    %v374 = vunpack.c.l.b16 %v335
    %v375 = vunpack.c.l.b16 %v336
    %v376 = vunpack.c.l.b16 %v337
    %v377 = vpack.c.b16 %v362, %v361
    %v378 = vpack.c.b16 %v364, %v363
    %v379 = vpack.c.b16 %v366, %v365
    %v380 = vpack.c.b16 %v368, %v367
    %v381 = vpack.c.b16 %v370, %v369
    %v382 = vpack.c.b16 %v372, %v371
    %v383 = vpack.c.b16 %v374, %v373
    %v384 = vpack.c.b16 %v376, %v375
    %393 = vmatprep.subr.bf16.mxu0 0
    %394 = vmatpush1.bf16.msra.mxu0 %v377
    %395 = vmatprep.subr.bf16.mxu0 0
    %396 = vmatpush1.bf16.msra.mxu0 %v378
    %397 = vmatprep.subr.bf16.mxu0 0
    %398 = vmatpush1.bf16.msra.mxu0 %v379
    %399 = vmatprep.subr.bf16.mxu0 0
    %400 = vmatpush1.bf16.msra.mxu0 %v380
    %401 = vmatprep.subr.bf16.mxu0 0
    %402 = vmatpush1.bf16.msra.mxu0 %v381
    %403 = vmatprep.subr.bf16.mxu0 0
    %404 = vmatpush1.bf16.msra.mxu0 %v382
    %405 = vmatprep.subr.bf16.mxu0 0
    %406 = vmatpush1.bf16.msra.mxu0 %v383
    %407 = vmatprep.subr.bf16.mxu0 0
    %408 = vmatpush1.bf16.msra.mxu0 %v384
    %409 = vmatprep.subr.bf16.mxu0 0
    %410 = vmatpush1.bf16.msra.mxu0 0
    %411 = vmatprep.subr.bf16.mxu0 0
    %412 = vmatpush1.bf16.msra.mxu0 0
    %413 = vmatprep.subr.bf16.mxu0 0
    %414 = vmatpush1.bf16.msra.mxu0 0
    %415 = vmatprep.subr.bf16.mxu0 0
    %416 = vmatpush1.bf16.msra.mxu0 0
    %417 = vmatprep.subr.bf16.mxu0 0
    %418 = vmatpush1.bf16.msra.mxu0 0
    %419 = vmatprep.subr.bf16.mxu0 0
    %420 = vmatpush1.bf16.msra.mxu0 0
    %421 = vmatprep.subr.bf16.mxu0 0
    %422 = vmatpush1.bf16.msra.mxu0 0
    %423 = vmatprep.subr.bf16.mxu0 0
    %424 = vmatpush1.bf16.msra.mxu0 0
    %425 = vmatprep.mubr.bf16.mxu0 0
    %426 = vmatmul.mubr.bf16.gmra.mrb[0].mxu0 %v321
    %v427 = vpop.f32.mrb[0].mxu0
    %v428 = vadd.f32 %v343, %v427
    %v429 = vpop.f32.mrb[0].mxu0
    %v430 = vpop.f32.mrb[0].mxu0
    %v431 = vadd.f32 %v343, %v430
    %v432 = vpop.f32.mrb[0].mxu0
    %433 = vdwg.mxu0
    %v434 = vpack.c.bf16 %v431, %v428
    %v435 = vld [vmem:[#allocation7] sm:$0xf]
    %v436 = vld [vmem:[#allocation7 + $0x4] sm:$0xf]
    %v437 = vld [vmem:[#allocation7 + $0x8] sm:$0xf]
    %v438 = vld [vmem:[#allocation7 + $0xc] sm:$0xf]
    %v439 = vld [vmem:[#allocation7 + $0x10] sm:$0xf]
    %v440 = vld [vmem:[#allocation7 + $0x14] sm:$0xf]
    %v441 = vld [vmem:[#allocation7 + $0x18] sm:$0xf]
    %v442 = vld [vmem:[#allocation7 + $0x1c] sm:$0xf]
    %v443 = vld [vmem:[#allocation7 + $0x20] sm:$0xf]
    %v444 = vld [vmem:[#allocation7 + $0x24] sm:$0xf]
    %v445 = vld [vmem:[#allocation7 + $0x28] sm:$0xf]
    %v446 = vld [vmem:[#allocation7 + $0x2c] sm:$0xf]
    %v447 = vld [vmem:[#allocation7 + $0x30] sm:$0xf]
    %v448 = vld [vmem:[#allocation7 + $0x34] sm:$0xf]
    %v449 = vld [vmem:[#allocation7 + $0x38] sm:$0xf]
    %v450 = vld [vmem:[#allocation7 + $0x3c] sm:$0xf]
    %v451 = vld [vmem:[%s8] sm:$0x1]
    %v453 = vlaneseq
    %v454 = vshrl.u32 %v453, 7
    %v455 = vsub.s32 0, %v454
    %v456 = vrot.slane %v451, %v455
    %v474 = vunpack.c.l.b16 %v435
    %v475 = vunpack.c.l.b16 %v436
    %v476 = vunpack.c.l.b16 %v437
    %v477 = vunpack.c.l.b16 %v438
    %v478 = vunpack.c.l.b16 %v439
    %v479 = vunpack.c.l.b16 %v440
    %v480 = vunpack.c.l.b16 %v441
    %v481 = vunpack.c.l.b16 %v442
    %v482 = vunpack.c.l.b16 %v443
    %v483 = vunpack.c.l.b16 %v444
    %v484 = vunpack.c.l.b16 %v445
    %v485 = vunpack.c.l.b16 %v446
    %v486 = vunpack.c.l.b16 %v447
    %v487 = vunpack.c.l.b16 %v448
    %v488 = vunpack.c.l.b16 %v449
    %v489 = vunpack.c.l.b16 %v450
    %v490 = vpack.c.b16 %v475, %v474
    %v491 = vpack.c.b16 %v477, %v476
    %v492 = vpack.c.b16 %v479, %v478
    %v493 = vpack.c.b16 %v481, %v480
    %v494 = vpack.c.b16 %v483, %v482
    %v495 = vpack.c.b16 %v485, %v484
    %v496 = vpack.c.b16 %v487, %v486
    %v497 = vpack.c.b16 %v489, %v488
    %506 = vmatprep.subr.bf16.mxu0 0
    %507 = vmatpush1.bf16.msra.mxu0 %v490
    %508 = vmatprep.subr.bf16.mxu0 0
    %509 = vmatpush1.bf16.msra.mxu0 %v491
    %510 = vmatprep.subr.bf16.mxu0 0
    %511 = vmatpush1.bf16.msra.mxu0 %v492
    %512 = vmatprep.subr.bf16.mxu0 0
    %513 = vmatpush1.bf16.msra.mxu0 %v493
    %514 = vmatprep.subr.bf16.mxu0 0
    %515 = vmatpush1.bf16.msra.mxu0 %v494
    %516 = vmatprep.subr.bf16.mxu0 0
    %517 = vmatpush1.bf16.msra.mxu0 %v495
    %518 = vmatprep.subr.bf16.mxu0 0
    %519 = vmatpush1.bf16.msra.mxu0 %v496
    %520 = vmatprep.subr.bf16.mxu0 0
    %521 = vmatpush1.bf16.msra.mxu0 %v497
    %522 = vmatprep.subr.bf16.mxu0 0
    %523 = vmatpush1.bf16.msra.mxu0 0
    %524 = vmatprep.subr.bf16.mxu0 0
    %525 = vmatpush1.bf16.msra.mxu0 0
    %526 = vmatprep.subr.bf16.mxu0 0
    %527 = vmatpush1.bf16.msra.mxu0 0
    %528 = vmatprep.subr.bf16.mxu0 0
    %529 = vmatpush1.bf16.msra.mxu0 0
    %530 = vmatprep.subr.bf16.mxu0 0
    %531 = vmatpush1.bf16.msra.mxu0 0
    %532 = vmatprep.subr.bf16.mxu0 0
    %533 = vmatpush1.bf16.msra.mxu0 0
    %534 = vmatprep.subr.bf16.mxu0 0
    %535 = vmatpush1.bf16.msra.mxu0 0
    %536 = vmatprep.subr.bf16.mxu0 0
    %537 = vmatpush1.bf16.msra.mxu0 0
    %538 = vmatprep.mubr.bf16.mxu0 0
    %539 = vmatmul.mubr.bf16.gmra.mrb[0].mxu0 %v434
    %v540 = vpop.f32.mrb[0].mxu0
    %v541 = vadd.f32 %v456, %v540
    %v542 = vpop.f32.mrb[0].mxu0
    %v543 = vpop.f32.mrb[0].mxu0
    %v544 = vadd.f32 %v456, %v543
    %v545 = vpop.f32.mrb[0].mxu0
    %546 = vdwg.mxu0
    %547 = vst [vmem:[%s9] sm:$0xff] %v541
    %548 = vst [vmem:[%s9 + $0x8] sm:$0xff] %v544
    // Predicated region
    $region54: #{mlp_forward.1} parent=1 // pred_check
      _
    $region55: #{mlp_forward.1} parent=1 // pred_check_branch
      %550 = sbr.rel (0) target = $region57
    $region56: #{mlp_forward.1} parent=1 // pred_region
      _
    $region57: #{mlp_forward.1} parent=1 // pred_fallthru
      _
    // Predicated region
    $region58: #{mlp_forward.1} parent=1 // pred_check
      _
    $region59: #{mlp_forward.1} parent=1 // pred_check_branch
      %552 = sbr.rel (0) target = $region61
    $region60: #{mlp_forward.1} parent=1 // pred_region
      _
    $region61: #{mlp_forward.1} parent=1 // pred_fallthru
      _
    %553 = vsyncpa [#allocation3], 1
    %554 = vsyncpa [#allocation5], 1
    %555 = vsyncpa [#allocation8], 1

</llo_original>
